<compile_context>
chip_gen: v6e
topology: v6e:2x2x1
jax: 0.10.0
libtpu: 0.0.40
codegen_flags: <defaults>
</compile_context>

<pallas_src>
import functools

import jax
import jax.numpy as jnp
from jax import lax
from jax.experimental import pallas as pl
from jax.experimental.pallas import tpu as pltpu


_SUBLANES = 8
_LANES = 128
# Per-block working-set target in f32-equivalent bytes (review: 8-16 MiB on
# v6e/v7x, 4-6 MiB on v5e; 8 MiB double-buffered fits every generation once the
# scoped-VMEM limit is raised below).
_TARGET_BLOCK_BYTES = 8 * 1024 * 1024
_VMEM_LIMIT_BYTES = 48 * 1024 * 1024


def _round_rows(rows: int, total_rows: int) -> int:
    rows = max(_SUBLANES, (rows // _SUBLANES) * _SUBLANES)
    if rows >= total_rows:
        return total_rows          # whole extent in a single block
    return rows


def _choose_block_rows(total_rows: int, width: int) -> int:
    return _round_rows(_TARGET_BLOCK_BYTES // max(1, width * 4), total_rows)


# ------------------------------ kernel bodies ------------------------------ #

def _lane_dense_kernel(lp_ref, prw_ref, brw_ref, o_ref, acc_ref, *,
                       total_rows, block_rows, reduction, inv_batch):
    """Single-launch streaming column-sum over the (R, 128) flat view."""
    k = pl.program_id(0)
    nk = pl.num_programs(0)

    @pl.when(k == 0)
    def _init():
        acc_ref[...] = jnp.zeros_like(acc_ref)

    def _accumulate(x):
        acc_ref[...] += jnp.sum(x.astype(jnp.float32), axis=0, keepdims=True)

    if total_rows % block_rows != 0:
        # Only the last block has rows past the real data: keep the hot path
        # unmasked (pure loads + adds).
        @pl.when(k < nk - 1)
        def _fast():
            _accumulate(lp_ref[...])

        @pl.when(k == nk - 1)
        def _tail():
            x = lp_ref[...]
            row = k * block_rows + lax.broadcasted_iota(jnp.int32, x.shape, 0)
            _accumulate(jnp.where(row < total_rows, x, jnp.zeros_like(x)))
    else:
        _accumulate(lp_ref[...])

    @pl.when(k == nk - 1)
    def _finalize():
        # prw/brw hold reward[lane % B]; (brw - prw) * acc is the per-lane
        # partial loss.  Its full lane sum equals the batch-summed loss, and
        # its (lane % B == b) fold equals the per-column loss.
        wide_loss = (brw_ref[...].astype(jnp.float32)
                     - prw_ref[...].astype(jnp.float32)) * acc_ref[...]
        if reduction == "none":
            o_ref[...] = wide_loss                       # (1, 128) f32
        elif reduction == "sum":
            o_ref[0, 0] = jnp.sum(wide_loss)
        else:  # 'mean' over the batch dim, fused
            o_ref[0, 0] = jnp.sum(wide_loss) * jnp.float32(inv_batch)


def _direct_kernel(lp_ref, pr_ref, br_ref, o_ref, acc_ref, *,
                   seq_len, batch, block_rows, block_cols, reduction,
                   inv_batch):
    """(S, B) path for batch >= 128 (already lane-dense) or 128 % batch != 0."""
    j = pl.program_id(0)          # column (batch) block
    k = pl.program_id(1)          # row (seq) block — reduction axis, last
    nk = pl.num_programs(1)

    @pl.when(k == 0)
    def _init_acc():
        acc_ref[...] = jnp.zeros_like(acc_ref)

    if reduction != "none":
        @pl.when((j == 0) & (k == 0))
        def _init_out():
            o_ref[0, 0] = jnp.float32(0.0)

    def _accumulate(x):
        acc_ref[...] += jnp.sum(x.astype(jnp.float32), axis=0, keepdims=True)

    if seq_len % block_rows != 0:
        @pl.when(k < nk - 1)
        def _fast():
            _accumulate(lp_ref[...])

        @pl.when(k == nk - 1)
        def _tail():
            x = lp_ref[...]
            row = k * block_rows + lax.broadcasted_iota(jnp.int32, x.shape, 0)
            _accumulate(jnp.where(row < seq_len, x, jnp.zeros_like(x)))
    else:
        _accumulate(lp_ref[...])

    @pl.when(k == nk - 1)
    def _finalize():
        advantage = (br_ref[...].astype(jnp.float32)
                     - pr_ref[...].astype(jnp.float32))
        loss = advantage * acc_ref[...]                  # (1, block_cols) f32
        if reduction == "none":
            o_ref[...] = loss.astype(o_ref.dtype)        # OOB lanes are dropped
        else:
            if batch % block_cols != 0:
                col = j * block_cols + lax.broadcasted_iota(
                    jnp.int32, loss.shape, 1)
                loss = jnp.where(col < batch, loss, jnp.zeros_like(loss))
            contrib = jnp.sum(loss)
            if reduction == "mean":
                contrib = contrib * jnp.float32(inv_batch)
            o_ref[0, 0] += contrib                       # accumulate over j


# ------------------------------ host wrapper ------------------------------- #

@functools.partial(jax.jit, static_argnames=("reduction", "block_rows"))
def policy_learning_loss(log_probabilities, predicted_reward, baseline_reward,
                         *, reduction: str = "mean", block_rows=None):
    if reduction not in ("mean", "sum", "none"):
        raise ValueError(f"{reduction} is not a valid value for reduction")

    seq_len, batch = log_probabilities.shape
    out_dtype = jnp.result_type(log_probabilities.dtype,
                                predicted_reward.dtype,
                                baseline_reward.dtype)
    itemsize = jnp.dtype(log_probabilities.dtype).itemsize
    inv_batch = 1.0 / batch
    n = seq_len * batch

    lane_dense = (batch < _LANES) and (_LANES % batch == 0)

    if lane_dense:
        # ----- lane-dense flat view: (S, B) -> (R, 128) ------------------- #
        total_rows = -(-n // _LANES)
        pad = total_rows * _LANES - n
        flat = log_probabilities.reshape(-1)             # free (row-major view)
        if pad:
            # One extra HBM pass only when S*B is not a 128-multiple; the
            # zeros do not change any of the sums.
            flat = jnp.pad(flat, (0, pad))
        lp2 = flat.reshape(total_rows, _LANES)

        reps = _LANES // batch
        prw = jnp.tile(predicted_reward.reshape(1, batch), (1, reps))
        brw = jnp.tile(baseline_reward.reshape(1, batch), (1, reps))

        if block_rows is None:
            block_rows = _choose_block_rows(total_rows, _LANES)
        block_rows = min(block_rows, total_rows)
        if block_rows < total_rows and block_rows % _SUBLANES != 0:
            raise ValueError("block_rows must be a multiple of 8")
        num_blocks = -(-total_rows // block_rows)

        if reduction == "none":
            out_shape = jax.ShapeDtypeStruct((1, _LANES), jnp.float32)
            out_spec = pl.BlockSpec((1, _LANES), lambda k: (0, 0))
        else:
            out_shape = jax.ShapeDtypeStruct((1, 1), jnp.float32)
            out_spec = pl.BlockSpec((1, 1), lambda k: (0, 0),
                                    memory_space=pltpu.SMEM)

        reward_spec = pl.BlockSpec((1, _LANES), lambda k: (0, 0))
        cost = pl.CostEstimate(flops=2 * n + 4 * _LANES, transcendentals=0,
                               bytes_accessed=n * itemsize + 3 * _LANES * 4)

        out = pl.pallas_call(
            functools.partial(_lane_dense_kernel,
                              total_rows=total_rows, block_rows=block_rows,
                              reduction=reduction, inv_batch=inv_batch),
            out_shape=out_shape,
            grid_spec=pltpu.PrefetchScalarGridSpec(
                num_scalar_prefetch=0,
                grid=(num_blocks,),
                in_specs=[pl.BlockSpec((block_rows, _LANES), lambda k: (k, 0)),
                          reward_spec, reward_spec],
                out_specs=out_spec,
                scratch_shapes=[pltpu.VMEM((1, _LANES), jnp.float32)]),
            compiler_params=pltpu.CompilerParams(
                dimension_semantics=("arbitrary",),
                vmem_limit_bytes=_VMEM_LIMIT_BYTES),
            cost_estimate=cost,
        )(lp2, prw, brw)

        if reduction == "none":
            # Tiny 128-element lane fold (lane % B == b) stays in XLA.
            return out.reshape(reps, batch).sum(axis=0).astype(out_dtype)
        return out[0, 0].astype(out_dtype)

    # ----- direct (S, B) path ---------------------------------------------- #
    pr = predicted_reward.reshape(1, batch)
    br = baseline_reward.reshape(1, batch)

    # Wide-batch guard: never emit a block bigger than the budget; tile the
    # lane (batch) axis with a 2-D grid when needed.
    max_cols = max(_LANES,
                   (_TARGET_BLOCK_BYTES // (4 * _SUBLANES * _LANES)) * _LANES)
    block_cols = batch if batch <= max_cols else max_cols
    if block_rows is None:
        block_rows = _choose_block_rows(seq_len, block_cols)
    block_rows = min(block_rows, seq_len)
    if block_rows < seq_len and block_rows % _SUBLANES != 0:
        raise ValueError("block_rows must be a multiple of 8")
    num_row_blocks = -(-seq_len // block_rows)
    num_col_blocks = -(-batch // block_cols)

    if reduction == "none":
        out_shape = jax.ShapeDtypeStruct((1, batch), out_dtype)
        out_spec = pl.BlockSpec((1, block_cols), lambda j, k: (0, j))
        dims = ("parallel", "arbitrary")
    else:
        out_shape = jax.ShapeDtypeStruct((1, 1), jnp.float32)
        out_spec = pl.BlockSpec((1, 1), lambda j, k: (0, 0),
                                memory_space=pltpu.SMEM)
        dims = ("arbitrary", "arbitrary")

    reward_spec = pl.BlockSpec((1, block_cols), lambda j, k: (0, j))
    cost = pl.CostEstimate(flops=2 * n + 4 * batch, transcendentals=0,
                           bytes_accessed=n * itemsize + 3 * batch * 4)

    out = pl.pallas_call(
        functools.partial(_direct_kernel,
                          seq_len=seq_len, batch=batch,
                          block_rows=block_rows, block_cols=block_cols,
                          reduction=reduction, inv_batch=inv_batch),
        out_shape=out_shape,
        grid_spec=pltpu.PrefetchScalarGridSpec(
            num_scalar_prefetch=0,
            grid=(num_col_blocks, num_row_blocks),
            in_specs=[pl.BlockSpec((block_rows, block_cols),
                                   lambda j, k: (k, j)),
                      reward_spec, reward_spec],
            out_specs=out_spec,
            scratch_shapes=[pltpu.VMEM((1, block_cols), jnp.float32)]),
        compiler_params=pltpu.CompilerParams(
            dimension_semantics=dims,
            vmem_limit_bytes=_VMEM_LIMIT_BYTES),
        cost_estimate=cost,
    )(log_probabilities, pr, br)

    if reduction == "none":
        return out.reshape(batch).astype(out_dtype)
    return out[0, 0].astype(out_dtype)


# --------------------------------- modules ---------------------------------- #

class LossWithReduction:
    """JAX port of the abstract torch base class: validates/stores the reduction."""

    def __init__(self, reduction: str):
        if reduction not in ("mean", "sum", "none"):
            raise ValueError(f"{reduction} is not a valid value for reduction")
        self.reduction = reduction


class PolicyLearning(LossWithReduction):
    """Self-critical policy-gradient loss with a Pallas-fused reduction."""

    def __init__(self, vocab=None, reduction: str = "mean"):
        super().__init__(reduction)
        # TODO(synk): ROUGE-L reward (__compute_reward: vocab mutation + string
        # n-gram scoring) stays on the host; pass its outputs as reward arrays.
        self.vocab = vocab

    def forward(self, log_probabilities, predicted_reward, baseline_reward):
        return policy_learning_loss(log_probabilities, predicted_reward,
                                    baseline_reward, reduction=self.reduction)

    __call__ = forward


# ----------------------------------- main ----------------------------------- #

if __name__ == "__main__":
    key = jax.random.PRNGKey(0)
    k_lp, k_pr, k_br = jax.random.split(key, 3)

    def ref_loss(lp, pr, br, reduction):
        loss = (br - pr) * jnp.sum(lp, axis=0)
        if reduction == "mean":
            return jnp.mean(loss)
        if reduction == "sum":
            return jnp.sum(loss)
        return loss

    def check(out, expected, tag):
        assert jnp.allclose(out, expected, rtol=1e-5, atol=1e-4), tag

    # 1) Small shapes implied by the module (lane-dense path, single block).
    seq_len, batch = 24, 4
    log_probs = -jnp.abs(jax.random.normal(k_lp, (seq_len, batch), jnp.float32))
    pred_reward = jax.random.uniform(k_pr, (batch,), jnp.float32)
    base_reward = jax.random.uniform(k_br, (batch,), jnp.float32)
    for reduction in ("mean", "sum", "none"):
        out = PolicyLearning(reduction=reduction)(log_probs, pred_reward,
                                                  base_reward)
        jax.block_until_ready(out)
        check(out, ref_loss(log_probs, pred_reward, base_reward, reduction),
              f"lane_dense/{reduction}")

    # 2) Lane-dense multi-block path with a padded + masked tail block.
    s2, b2 = 200, 8
    lp2 = jax.random.normal(k_lp, (s2, b2), jnp.float32)
    pr2 = jax.random.uniform(k_pr, (b2,), jnp.float32)
    br2 = jax.random.uniform(k_br, (b2,), jnp.float32)
    for reduction in ("mean", "none"):
        out2 = policy_learning_loss(lp2, pr2, br2, reduction=reduction,
                                    block_rows=8)
        jax.block_until_ready(out2)
        check(out2, ref_loss(lp2, pr2, br2, reduction),
              f"lane_dense_multiblock/{reduction}")

    # 3) Direct path (batch >= 128, not a 128-multiple) with a masked seq tail.
    s3, b3 = 50, 160
    lp3 = jax.random.normal(k_lp, (s3, b3), jnp.float32)
    pr3 = jax.random.uniform(k_pr, (b3,), jnp.float32)
    br3 = jax.random.uniform(k_br, (b3,), jnp.float32)
    for reduction in ("sum", "none"):
        out3 = policy_learning_loss(lp3, pr3, br3, reduction=reduction,
                                    block_rows=16)
        jax.block_until_ready(out3)
        check(out3, ref_loss(lp3, pr3, br3, reduction), f"direct/{reduction}")

    # 4) Direct fallback for a small batch that does not divide 128.
    s4, b4 = 33, 5
    lp4 = jax.random.normal(k_lp, (s4, b4), jnp.float32)
    pr4 = jax.random.uniform(k_pr, (b4,), jnp.float32)
    br4 = jax.random.uniform(k_br, (b4,), jnp.float32)
    out4 = policy_learning_loss(lp4, pr4, br4, reduction="mean")
    jax.block_until_ready(out4)
    check(out4, ref_loss(lp4, pr4, br4, "mean"), "direct_small/mean")

    print("KERNEL_OK")
</pallas_src>

<mosaic_0001>
module attributes {stable_mosaic.version = 11 : i64} {
  func.func @_lane_dense_kernel(%arg0: i32, %arg1: memref<1x128xf32, #tpu.memory_space<vmem>>, %arg2: memref<1x128xf32, #tpu.memory_space<vmem>>, %arg3: memref<1x128xf32, #tpu.memory_space<vmem>>, %arg4: memref<1x1xf32, #tpu.memory_space<smem>>, %arg5: memref<1x128xf32, #tpu.memory_space<vmem>>) attributes {dimension_semantics = [#tpu.dimension_semantics<arbitrary>], iteration_bounds = array<i64: 1>, scalar_prefetch = 0 : i64, scratch_operands = 1 : i64, tpu.core_type = #tpu.core_type<tc>, window_params = [{transform_indices = @transform_0, window_bounds = array<i64: 1, 128>}, {pipeline_mode = #tpu.pipeline_mode<synchronous>, transform_indices = @transform_1, window_bounds = array<i64: 1, 128>}, {pipeline_mode = #tpu.pipeline_mode<synchronous>, transform_indices = @transform_2, window_bounds = array<i64: 1, 128>}, {transform_indices = @transform_3, window_bounds = array<i64: 1, 1>}]} {
    %c0_i32 = arith.constant 0 : i32
    %0 = arith.cmpi eq, %arg0, %c0_i32 : i32
    %1 = arith.extui %0 : i1 to i32
    %c0_i32_0 = arith.constant 0 : i32
    %2 = arith.cmpi ne, %1, %c0_i32_0 : i32
    scf.if %2 {
      %cst_8 = arith.constant 0.000000e+00 : f32
      %12 = vector.broadcast %cst_8 : f32 to vector<1x128xf32>
      %c0_9 = arith.constant 0 : index
      %c0_10 = arith.constant 0 : index
      %13 = vector.load %arg5[%c0_9, %c0_10] : memref<1x128xf32, #tpu.memory_space<vmem>>, vector<1x128xf32>
      tpu.vector_store %arg5[%c0_9, %c0_10], %12 {strides = array<i32>} : memref<1x128xf32, #tpu.memory_space<vmem>>, vector<1x128xf32>,
    } else {
    }
    %c0 = arith.constant 0 : index
    %c0_1 = arith.constant 0 : index
    %3 = vector.load %arg1[%c0, %c0_1] : memref<1x128xf32, #tpu.memory_space<vmem>>, vector<1x128xf32>
    %c0_2 = arith.constant 0 : index
    %c0_3 = arith.constant 0 : index
    %4 = vector.load %arg5[%c0_2, %c0_3] : memref<1x128xf32, #tpu.memory_space<vmem>>, vector<1x128xf32>
    %cst = arith.constant dense<0.000000e+00> : vector<128xf32>
    %5 = vector.multi_reduction <add>, %3, %cst [0] : vector<1x128xf32> to vector<128xf32>
    %6 = vector.shape_cast %5 : vector<128xf32> to vector<1x128xf32>
    %7 = arith.addf %4, %6 : vector<1x128xf32>
    %c0_4 = arith.constant 0 : index
    %c0_5 = arith.constant 0 : index
    %8 = vector.load %arg5[%c0_4, %c0_5] : memref<1x128xf32, #tpu.memory_space<vmem>>, vector<1x128xf32>
    tpu.vector_store %arg5[%c0_4, %c0_5], %7 {strides = array<i32>} : memref<1x128xf32, #tpu.memory_space<vmem>>, vector<1x128xf32>,
    %c0_i32_6 = arith.constant 0 : i32
    %9 = arith.cmpi eq, %arg0, %c0_i32_6 : i32
    %10 = arith.extui %9 : i1 to i32
    %c0_i32_7 = arith.constant 0 : i32
    %11 = arith.cmpi ne, %10, %c0_i32_7 : i32
    scf.if %11 {
      %c0_8 = arith.constant 0 : index
      %c0_9 = arith.constant 0 : index
      %12 = vector.load %arg3[%c0_8, %c0_9] : memref<1x128xf32, #tpu.memory_space<vmem>>, vector<1x128xf32>
      %c0_10 = arith.constant 0 : index
      %c0_11 = arith.constant 0 : index
      %13 = vector.load %arg2[%c0_10, %c0_11] : memref<1x128xf32, #tpu.memory_space<vmem>>, vector<1x128xf32>
      %14 = arith.subf %12, %13 : vector<1x128xf32>
      %c0_12 = arith.constant 0 : index
      %c0_13 = arith.constant 0 : index
      %15 = vector.load %arg5[%c0_12, %c0_13] : memref<1x128xf32, #tpu.memory_space<vmem>>, vector<1x128xf32>
      %16 = arith.mulf %14, %15 : vector<1x128xf32>
      %17 = vector.shape_cast %16 : vector<1x128xf32> to vector<1x1x128xf32>
      %cst_14 = arith.constant dense<0.000000e+00> : vector<1xf32>
      %18 = vector.multi_reduction <add>, %17, %cst_14 [1, 2] : vector<1x1x128xf32> to vector<1xf32>
      %19 = vector.shape_cast %18 : vector<1xf32> to vector<1x1x1xf32>
      %20 = vector.extract %19[0, 0, 0] : f32 from vector<1x1x1xf32>
      %cst_15 = arith.constant 2.500000e-01 : f32
      %21 = arith.mulf %20, %cst_15 : f32
      %c0_16 = arith.constant 0 : index
      %c0_17 = arith.constant 0 : index
      %22 = memref.load %arg4[%c0_16, %c0_17] : memref<1x1xf32, #tpu.memory_space<smem>>
      memref.store %21, %arg4[%c0_16, %c0_17] : memref<1x1xf32, #tpu.memory_space<smem>>
    } else {
    }
    return
  }
  func.func @transform_0(%arg0: i32) -> (i32, i32) {
    %c0_i32 = arith.constant 0 : i32
    %c0_i32_0 = arith.constant 0 : i32
    return %arg0, %c0_i32 : i32, i32
  }
  func.func @transform_1(%arg0: i32) -> (i32, i32) {
    %c0_i32 = arith.constant 0 : i32
    %c0_i32_0 = arith.constant 0 : i32
    %c0_i32_1 = arith.constant 0 : i32
    return %c0_i32, %c0_i32_0 : i32, i32
  }
  func.func @transform_2(%arg0: i32) -> (i32, i32) {
    %c0_i32 = arith.constant 0 : i32
    %c0_i32_0 = arith.constant 0 : i32
    %c0_i32_1 = arith.constant 0 : i32
    return %c0_i32, %c0_i32_0 : i32, i32
  }
  func.func @transform_3(%arg0: i32) -> (i32, i32) {
    %c0_i32 = arith.constant 0 : i32
    %c0_i32_0 = arith.constant 0 : i32
    %c0_i32_1 = arith.constant 0 : i32
    return %c0_i32, %c0_i32_0 : i32, i32
  }
}

</mosaic_0001>

<llo_original>
// kernel: policy_learning_loss.1
$region0: #{policy_learning_loss.1}
  #allocation0 [shape = 'u32[]', space=smem, size = 0x4, offset = 0x4, fixed_abs, tag = 'smem constant byte address 0x4 - core index']
  #allocation1 [shape = 'u32[144,128]{1,0:T(1,128)}', space=vmem, size = 0x12000, scoped, tag = 'internal scratch']
  #allocation2 [shape = 'f32[1,128]{1,0:T(1,128)}', space=vmem, size = 0x200, scoped, tag = 'scratch operand']
  %s0 = inlined_call_operand.vmem [shape: f32[1,128], index: 0, kind: input, shape index: {}]
  %s1 = inlined_call_operand.vmem [shape: f32[1,128], index: 1, kind: input, shape index: {}]
  %s2 = inlined_call_operand.vmem [shape: f32[1,128], index: 2, kind: input, shape index: {}]
  %s3 = inlined_call_operand.hbm [shape: f32[1,1], index: 3, kind: output, shape index: {}]
  %s4 = sld [smem:[#allocation0]]
  $region30: #{policy_learning_loss.1} parent=0
    _
  %s6 = ssub.s32 1, %s4
  %s7 = scalar_select 0, %s6, %s4
  $region1: #{policy_learning_loss.1} parent=0
    #allocation3 [shape = 'u8[512]{0}', space=smem, size = 0x200, scoped, tag = 'output window, operand 0, single buffered']
    #allocation4 [shape = 's32[1]{0}', space=sflag, size = 0x4, scoped, tag = 'scoped memory for policy_learning_loss.1']
    %8 = vsyncpa [#allocation4], 0
    // Predicated region
    $region2: #{policy_learning_loss.1} parent=1 // pred_check
      _
    $region3: #{policy_learning_loss.1} parent=1 // pred_check_branch
      %10 = sbr.rel (0) target = $region5
    $region4: #{policy_learning_loss.1} parent=1 // pred_region
      _
    $region5: #{policy_learning_loss.1} parent=1 // pred_fallthru
      _
    // Predicated region
    $region6: #{policy_learning_loss.1} parent=1 // pred_check
      _
    $region7: #{policy_learning_loss.1} parent=1 // pred_check_branch
      %12 = sbr.rel (0) target = $region9
    $region8: #{policy_learning_loss.1} parent=1 // pred_region
      _
    $region9: #{policy_learning_loss.1} parent=1 // pred_fallthru
      _
    // Predicated region
    $region10: #{policy_learning_loss.1} parent=1 // pred_check
      _
    $region11: #{policy_learning_loss.1} parent=1 // pred_check_branch
      %14 = sbr.rel (0) target = $region13
    $region12: #{policy_learning_loss.1} parent=1 // pred_region
      _
    $region13: #{policy_learning_loss.1} parent=1 // pred_fallthru
      _
    %p15 = scmp.eq.s32.totalorder 0, 0
    // Predicated region
    $region14: #{policy_learning_loss.1} parent=1 // pred_check
      %p16 = pneg %p15
    $region15: #{policy_learning_loss.1} parent=1 // pred_check_branch
      %18 = sbr.rel (%p16) target = $region17
    $region16: #{policy_learning_loss.1} parent=1 // pred_region
      %19 = vst [vmem:[#allocation2] sm:$0x1] 0.0
    $region17: #{policy_learning_loss.1} parent=1 // pred_fallthru
      _
    %v20 = vld [vmem:[%s0] sm:$0x1]
    %v21 = vld [vmem:[#allocation2] sm:$0x1]
    %v22 = vadd.f32 %v20, 0.0
    %v23 = vadd.f32 %v21, %v22
    %24 = vst [vmem:[#allocation2] sm:$0x1] %v23
    // Predicated region
    $region18: #{policy_learning_loss.1} parent=1 // pred_check
      %p25 = pneg %p15
    $region19: #{policy_learning_loss.1} parent=1 // pred_check_branch
      %27 = sbr.rel (%p25) target = $region21
    $region20: #{policy_learning_loss.1} parent=1 // pred_region
      %v28 = vld [vmem:[%s2] sm:$0x1]
      %v29 = vld [vmem:[%s1] sm:$0x1]
      %v30 = vsub.f32 %v28, %v29
      %v31 = vld [vmem:[#allocation2] sm:$0x1]
      %v32 = vmul.f32 %v30, %v31
      %vm33 = vcmask 1040384
      %v34 = vsel %vm33, %v32, 0.0
      %35 = vadd.xlane.f32.xlu0 %v34
      %v36 = vpop.xlane.xlu0 %35
      %v37 = vrot.slane %v36, 4
      %v38 = vadd.f32 %v36, %v37
      %v39 = vrot.slane %v38, 2
      %v40 = vadd.f32 %v38, %v39
      %v41 = vrot.slane %v40, 1
      %v42 = vadd.f32 %v40, %v41
      %s43 = vtos %v42
      %s44 = smul.f32 %s43, 0.25
      %s45 = scalar_lea.smem [#allocation3], 0
      %46 = sst [smem:[%s45]] %s44
    $region21: #{policy_learning_loss.1} parent=1 // pred_fallthru
      _
    // Predicated region
    $region22: #{policy_learning_loss.1} parent=1 // pred_check
      _
    $region23: #{policy_learning_loss.1} parent=1 // pred_check_branch
      %48 = sbr.rel (0) target = $region25
    $region24: #{policy_learning_loss.1} parent=1 // pred_region
      %s50 = ssub.s32 16, 16
      %51 = vsyncadd [#allocation4], %s50
      %54 = dma.smem_to_hbm [#allocation3], 16, %s3, [#allocation4]
    $region25: #{policy_learning_loss.1} parent=1 // pred_fallthru
      _
    // Predicated region
    $region26: #{policy_learning_loss.1} parent=1 // pred_check
      _
    $region27: #{policy_learning_loss.1} parent=1 // pred_check_branch
      %56 = sbr.rel (0) target = $region29
    $region28: #{policy_learning_loss.1} parent=1 // pred_region
      %57 = dma.done [#allocation4], 16
    $region29: #{policy_learning_loss.1} parent=1 // pred_fallthru
      _
    %58 = sfence
    %59 = vsyncpa [#allocation4], 1

</llo_original>
